<compile_context>
chip_gen: v7x
topology: tpu7x:2x2x1
jax: 0.10.0
libtpu: 0.0.40
codegen_flags: <defaults>
</compile_context>

<pallas_src>
import functools
import math

import jax
import jax.numpy as jnp
from jax.experimental import pallas as pl
from jax.experimental.pallas import tpu as pltpu

_LOG_2PI_HALF = 0.5 * math.log(2.0 * math.pi)
# softplus(_RHO_NEUTRAL) == 1  ->  padded elements have sigma = 1, log(sigma) = 0, and with
# mu = eps = 0 they contribute exactly 0 to the matmul and to every KL reduction.
_RHO_NEUTRAL = math.log(math.e - 1.0)


def _round_up(v, m):
    return (v + m - 1) // m * m


def _softplus(x):
    # matches torch.nn.functional.softplus (beta=1)
    return jnp.logaddexp(x, 0.0)


# --------------------------------------------------------------------------------------
# Training-path kernel: sample W/b, matmul, and per-N-tile KL partial sums.
# Grid = (grid_n, grid_k); K is the reduction axis (last, "arbitrary").
# --------------------------------------------------------------------------------------
def _dense_bbb_kernel(x_ref, mu_w_ref, rho_w_ref, eps_w_ref,
                      mu_b_ref, rho_b_ref, eps_b_ref,
                      out_ref, lp_ref, lq_ref,
                      acc_ref, b_ref, sums_ref,
                      *, inv_two_var_prior):
    k = pl.program_id(1)
    k_last = pl.num_programs(1) - 1

    # Sample the weight tile:  W = mu + softplus(rho) * eps
    eps_w = eps_w_ref[...]
    sigma_w = _softplus(rho_w_ref[...])
    w = mu_w_ref[...] + sigma_w * eps_w

    @pl.when(k == 0)
    def _init():
        acc_ref[...] = jnp.zeros_like(acc_ref)
        # Bias tile: sampled once per N tile (does not vary with k).
        eps_b = eps_b_ref[...]
        sigma_b = _softplus(rho_b_ref[...])
        b = mu_b_ref[...] + sigma_b * eps_b
        b_ref[...] = b
        # KL partials (constants hoisted to the wrapper):
        #   prior:     -1/(2*sigma_prior^2) * sum(v^2)
        #   posterior: -sum(log sigma) - 0.5 * sum(eps^2)      [exact: (v-mu)^2/(2s^2)=eps^2/2]
        sums_ref[0] = -inv_two_var_prior * jnp.sum(b * b)
        sums_ref[1] = -jnp.sum(jnp.log(sigma_b)) - 0.5 * jnp.sum(eps_b * eps_b)

    # Matmul accumulation on the MXU (f32 accumulator).
    acc_ref[...] += jnp.dot(x_ref[...], w, preferred_element_type=jnp.float32)

    # Weight-tile KL partials, accumulated across K in SMEM scratch.
    sums_ref[0] += -inv_two_var_prior * jnp.sum(w * w)
    sums_ref[1] += -jnp.sum(jnp.log(sigma_w)) - 0.5 * jnp.sum(eps_w * eps_w)

    @pl.when(k == k_last)
    def _finalize():
        out_ref[...] = (acc_ref[...] + b_ref[...]).astype(out_ref.dtype)
        lp_ref[0, 0] = sums_ref[0]
        lq_ref[0, 0] = sums_ref[1]


# --------------------------------------------------------------------------------------
# Inference-path kernel: output = x @ mu_W + mu_b only (no rho/eps traffic, no KL).
# --------------------------------------------------------------------------------------
def _dense_inference_kernel(x_ref, mu_w_ref, mu_b_ref, out_ref, acc_ref):
    k = pl.program_id(1)

    @pl.when(k == 0)
    def _init():
        acc_ref[...] = jnp.zeros_like(acc_ref)

    acc_ref[...] += jnp.dot(x_ref[...], mu_w_ref[...],
                            preferred_element_type=jnp.float32)

    @pl.when(k == pl.num_programs(1) - 1)
    def _finalize():
        out_ref[...] = (acc_ref[...] + mu_b_ref[...]).astype(out_ref.dtype)


# --------------------------------------------------------------------------------------
# Wrapper
# --------------------------------------------------------------------------------------
def dense_layer_forward(x, mu_w, rho_w, eps_w, mu_b, rho_b, eps_b,
                        *, sigma_prior, inference=False,
                        tile_k=512, tile_n=512):
    """Pallas implementation of DenseLayer.forward.

    inference=False -> (output, log_prior_ll, log_posterior_ll)
    inference=True  -> output only (x @ mu_W + mu_b), matching the PyTorch branch.
    """
    f32 = jnp.float32
    B, n_in = x.shape
    n_out = mu_w.shape[1]

    # Lane-dense padding: batch -> multiple of 8 (sublane), K/N -> multiples of 128 (lane),
    # then to multiples of the chosen tiles.
    B_pad = _round_up(B, 8)
    K_pad = _round_up(n_in, 128)
    N_pad = _round_up(n_out, 128)
    TK = min(int(tile_k), K_pad)
    TN = min(int(tile_n), N_pad)
    K_pad = _round_up(K_pad, TK)
    N_pad = _round_up(N_pad, TN)
    grid_n = N_pad // TN
    grid_k = K_pad // TK

    x_p = jnp.pad(x.astype(f32), ((0, B_pad - B), (0, K_pad - n_in)))
    mu_b2 = mu_b.astype(f32).reshape(1, n_out)

    compiler_params = pltpu.CompilerParams(
        dimension_semantics=("parallel", "arbitrary"))

    if inference:
        mu_w_p = jnp.pad(mu_w.astype(f32),
                         ((0, K_pad - n_in), (0, N_pad - n_out)))
        mu_b_p = jnp.pad(mu_b2, ((0, 0), (0, N_pad - n_out)))
        out = pl.pallas_call(
            _dense_inference_kernel,
            out_shape=jax.ShapeDtypeStruct((B_pad, N_pad), f32),
            grid_spec=pltpu.PrefetchScalarGridSpec(
                num_scalar_prefetch=0,
                grid=(grid_n, grid_k),
                in_specs=[
                    pl.BlockSpec((B_pad, TK), lambda n, k: (0, k)),
                    pl.BlockSpec((TK, TN), lambda n, k: (k, n)),
                    pl.BlockSpec((1, TN), lambda n, k: (0, n)),
                ],
                out_specs=pl.BlockSpec((B_pad, TN), lambda n, k: (0, n)),
                scratch_shapes=[pltpu.VMEM((B_pad, TN), f32)],
            ),
            compiler_params=compiler_params,
            cost_estimate=pl.CostEstimate(
                flops=2 * B * n_in * n_out,
                transcendentals=0,
                bytes_accessed=4 * (n_in * n_out + B * n_in + B * n_out + n_out)),
        )(x_p, mu_w_p, mu_b_p)
        return out[:B, :n_out]

    # ----- training path: sample, matmul, KL reductions -----
    def pad_w(a, val):
        return jnp.pad(a.astype(f32), ((0, K_pad - n_in), (0, N_pad - n_out)),
                       constant_values=val)

    def pad_b(a, val):
        return jnp.pad(a.astype(f32).reshape(1, n_out),
                       ((0, 0), (0, N_pad - n_out)), constant_values=val)

    mu_w_p = pad_w(mu_w, 0.0)
    rho_w_p = pad_w(rho_w, _RHO_NEUTRAL)   # sigma = 1 in padding -> neutral for KL
    eps_w_p = pad_w(eps_w, 0.0)
    mu_b_p = pad_b(mu_b, 0.0)
    rho_b_p = pad_b(rho_b, _RHO_NEUTRAL)
    eps_b_p = pad_b(eps_b, 0.0)

    sigma_prior = float(sigma_prior)
    inv_two_var_prior = 1.0 / (2.0 * sigma_prior * sigma_prior)
    kernel = functools.partial(_dense_bbb_kernel,
                               inv_two_var_prior=inv_two_var_prior)

    smem_scalar_spec = pl.BlockSpec((1, 1), lambda n, k: (n, 0),
                                    memory_space=pltpu.MemorySpace.SMEM)

    numel = n_in * n_out + n_out
    cost = pl.CostEstimate(
        flops=2 * B * n_in * n_out + 10 * numel,
        transcendentals=3 * numel,                       # softplus (exp, log1p) + log(sigma)
        bytes_accessed=4 * (3 * n_in * n_out + 3 * n_out + B * n_in + B * n_out))

    out, lp_part, lq_part = pl.pallas_call(
        kernel,
        out_shape=(
            jax.ShapeDtypeStruct((B_pad, N_pad), f32),
            jax.ShapeDtypeStruct((grid_n, 1), f32),
            jax.ShapeDtypeStruct((grid_n, 1), f32),
        ),
        grid_spec=pltpu.PrefetchScalarGridSpec(
            num_scalar_prefetch=0,
            grid=(grid_n, grid_k),
            in_specs=[
                pl.BlockSpec((B_pad, TK), lambda n, k: (0, k)),   # x
                pl.BlockSpec((TK, TN), lambda n, k: (k, n)),      # mu_W
                pl.BlockSpec((TK, TN), lambda n, k: (k, n)),      # rho_W
                pl.BlockSpec((TK, TN), lambda n, k: (k, n)),      # eps_W
                pl.BlockSpec((1, TN), lambda n, k: (0, n)),       # mu_b
                pl.BlockSpec((1, TN), lambda n, k: (0, n)),       # rho_b
                pl.BlockSpec((1, TN), lambda n, k: (0, n)),       # eps_b
            ],
            out_specs=(
                pl.BlockSpec((B_pad, TN), lambda n, k: (0, n)),   # output tile
                smem_scalar_spec,                                 # prior partial per N tile
                smem_scalar_spec,                                 # posterior partial per N tile
            ),
            scratch_shapes=[
                pltpu.VMEM((B_pad, TN), f32),   # matmul accumulator
                pltpu.VMEM((1, TN), f32),       # sampled bias tile (reused across K)
                pltpu.SMEM((2,), f32),          # [prior, posterior] running sums
            ],
        ),
        compiler_params=compiler_params,
        cost_estimate=cost,
    )(x_p, mu_w_p, rho_w_p, eps_w_p, mu_b_p, rho_b_p, eps_b_p)

    # Hoisted per-element constants, added once (exact -- not an approximation).
    prior_const = -(_LOG_2PI_HALF + math.log(sigma_prior))
    post_const = -_LOG_2PI_HALF
    log_prior_ll = jnp.float32(numel * prior_const) + jnp.sum(lp_part)
    log_posterior_ll = jnp.float32(numel * post_const) + jnp.sum(lq_part)
    return out[:B, :n_out], log_prior_ll, log_posterior_ll


# --------------------------------------------------------------------------------------
# Pure-JAX reference of the PyTorch semantics (for validation)
# --------------------------------------------------------------------------------------
def _reference_forward(x, mu_w, rho_w, eps_w, mu_b, rho_b, eps_b, sigma_prior):
    sp = lambda v: jnp.logaddexp(v, 0.0)
    sigma_w, sigma_b = sp(rho_w), sp(rho_b)
    w = mu_w + sigma_w * eps_w
    b = mu_b + sigma_b * eps_b
    out = x @ w + b

    def log_gauss(v, mu, sigma):
        return -_LOG_2PI_HALF - jnp.log(sigma) - (v - mu) ** 2 / (2.0 * sigma ** 2)

    lp = jnp.sum(log_gauss(w, 0.0, jnp.float32(sigma_prior))) + \
         jnp.sum(log_gauss(b, 0.0, jnp.float32(sigma_prior)))
    lq = jnp.sum(log_gauss(w, mu_w, sigma_w)) + jnp.sum(log_gauss(b, mu_b, sigma_b))
    return out, lp, lq


if __name__ == "__main__":
    # Small, deterministic setup consistent with DenseLayer(n_input, n_output, sigma_prior)
    B, n_input, n_output = 8, 32, 16
    sigma_prior = 1.0
    initial_rho = -3.0

    key = jax.random.PRNGKey(0)
    k_x, k_mu_w, k_mu_b, k_eps_w, k_eps_b = jax.random.split(key, 5)

    x = jax.random.normal(k_x, (B, n_input), dtype=jnp.float32)

    # BayesianParameter init: mu ~ N(0, 0.1), rho = initial_rho
    mu_w = 0.1 * jax.random.normal(k_mu_w, (n_input, n_output), dtype=jnp.float32)
    rho_w = jnp.full((n_input, n_output), initial_rho, dtype=jnp.float32)
    mu_b = 0.1 * jax.random.normal(k_mu_b, (n_output,), dtype=jnp.float32)
    rho_b = jnp.full((n_output,), initial_rho, dtype=jnp.float32)

    # epsilon ~ N(0, 1) for the reparameterization sample (deterministic here)
    eps_w = jax.random.normal(k_eps_w, (n_input, n_output), dtype=jnp.float32)
    eps_b = jax.random.normal(k_eps_b, (n_output,), dtype=jnp.float32)

    out, log_prior_ll, log_posterior_ll = dense_layer_forward(
        x, mu_w, rho_w, eps_w, mu_b, rho_b, eps_b,
        sigma_prior=sigma_prior, inference=False)
    jax.block_until_ready((out, log_prior_ll, log_posterior_ll))

    # Validate against pure-JAX reference
    ref_out, ref_lp, ref_lq = _reference_forward(
        x, mu_w, rho_w, eps_w, mu_b, rho_b, eps_b, sigma_prior)
    assert jnp.allclose(out, ref_out, atol=1e-5, rtol=1e-5)
    assert jnp.allclose(log_prior_ll, ref_lp, atol=1e-2, rtol=1e-4)
    assert jnp.allclose(log_posterior_ll, ref_lq, atol=1e-2, rtol=1e-4)

    # Inference branch: dedicated kernel, x @ mu_W + mu_b only
    inf_out = dense_layer_forward(
        x, mu_w, rho_w, eps_w, mu_b, rho_b, eps_b,
        sigma_prior=sigma_prior, inference=True)
    jax.block_until_ready(inf_out)
    assert jnp.allclose(inf_out, x @ mu_w + mu_b, atol=1e-5, rtol=1e-5)

    print("KERNEL_OK")
</pallas_src>

<mosaic_0001>
module attributes {stable_mosaic.version = 11 : i64} {
  func.func @_dense_bbb_kernel(%arg0: i32, %arg1: i32, %arg2: memref<8x128xf32, #tpu.memory_space<vmem>>, %arg3: memref<128x128xf32, #tpu.memory_space<vmem>>, %arg4: memref<128x128xf32, #tpu.memory_space<vmem>>, %arg5: memref<128x128xf32, #tpu.memory_space<vmem>>, %arg6: memref<1x128xf32, #tpu.memory_space<vmem>>, %arg7: memref<1x128xf32, #tpu.memory_space<vmem>>, %arg8: memref<1x128xf32, #tpu.memory_space<vmem>>, %arg9: memref<8x128xf32, #tpu.memory_space<vmem>>, %arg10: memref<1x1xf32, #tpu.memory_space<smem>>, %arg11: memref<1x1xf32, #tpu.memory_space<smem>>, %arg12: memref<8x128xf32, #tpu.memory_space<vmem>>, %arg13: memref<1x128xf32, #tpu.memory_space<vmem>>, %arg14: memref<2xf32, #tpu.memory_space<smem>>) attributes {dimension_semantics = [#tpu.dimension_semantics<parallel>, #tpu.dimension_semantics<arbitrary>], iteration_bounds = array<i64: 1, 1>, scalar_prefetch = 0 : i64, scratch_operands = 3 : i64, tpu.core_type = #tpu.core_type<tc>, window_params = [{transform_indices = @transform_0, window_bounds = array<i64: 8, 128>}, {transform_indices = @transform_1, window_bounds = array<i64: 128, 128>}, {transform_indices = @transform_2, window_bounds = array<i64: 128, 128>}, {transform_indices = @transform_3, window_bounds = array<i64: 128, 128>}, {transform_indices = @transform_4, window_bounds = array<i64: 1, 128>}, {transform_indices = @transform_5, window_bounds = array<i64: 1, 128>}, {transform_indices = @transform_6, window_bounds = array<i64: 1, 128>}, {transform_indices = @transform_7, window_bounds = array<i64: 8, 128>}, {transform_indices = @transform_8, window_bounds = array<i64: 1, 1>}, {transform_indices = @transform_9, window_bounds = array<i64: 1, 1>}]} {
    %c0 = arith.constant 0 : index
    %c0_0 = arith.constant 0 : index
    %0 = vector.load %arg5[%c0, %c0_0] : memref<128x128xf32, #tpu.memory_space<vmem>>, vector<128x128xf32>
    %c0_1 = arith.constant 0 : index
    %c0_2 = arith.constant 0 : index
    %1 = vector.load %arg4[%c0_1, %c0_2] : memref<128x128xf32, #tpu.memory_space<vmem>>, vector<128x128xf32>
    %cst = arith.constant 0.000000e+00 : f32
    %2 = vector.broadcast %cst : f32 to vector<128x128xf32>
    %3 = arith.maximumf %1, %2 : vector<128x128xf32>
    %4 = vector.broadcast %cst : f32 to vector<128x128xf32>
    %5 = arith.subf %1, %4 : vector<128x128xf32>
    %6 = arith.cmpf one, %5, %5 : vector<128x128xf32>
    %7 = vector.broadcast %cst : f32 to vector<128x128xf32>
    %8 = arith.addf %1, %7 : vector<128x128xf32>
    %9 = math.absf %5 : vector<128x128xf32>
    %cst_3 = arith.constant 0.000000e+00 : f32
    %10 = vector.broadcast %cst_3 : f32 to vector<128x128xf32>
    %11 = arith.subf %10, %9 : vector<128x128xf32>
    %12 = math.exp %11 : vector<128x128xf32>
    %13 = math.log1p %12 : vector<128x128xf32>
    %14 = arith.addf %3, %13 : vector<128x128xf32>
    %15 = arith.select %6, %8, %14 : vector<128x128xi1>, vector<128x128xf32>
    %c0_4 = arith.constant 0 : index
    %c0_5 = arith.constant 0 : index
    %16 = vector.load %arg3[%c0_4, %c0_5] : memref<128x128xf32, #tpu.memory_space<vmem>>, vector<128x128xf32>
    %17 = arith.mulf %15, %0 : vector<128x128xf32>
    %18 = arith.addf %16, %17 : vector<128x128xf32>
    %c0_i32 = arith.constant 0 : i32
    %19 = arith.cmpi eq, %arg1, %c0_i32 : i32
    %20 = arith.extui %19 : i1 to i32
    %c0_i32_6 = arith.constant 0 : i32
    %21 = arith.cmpi ne, %20, %c0_i32_6 : i32
    scf.if %21 {
      %cst_25 = arith.constant 0.000000e+00 : f32
      %55 = vector.broadcast %cst_25 : f32 to vector<8x128xf32>
      %c0_26 = arith.constant 0 : index
      %c0_27 = arith.constant 0 : index
      %56 = vector.load %arg12[%c0_26, %c0_27] : memref<8x128xf32, #tpu.memory_space<vmem>>, vector<8x128xf32>
      tpu.vector_store %arg12[%c0_26, %c0_27], %55 {strides = array<i32>} : memref<8x128xf32, #tpu.memory_space<vmem>>, vector<8x128xf32>,
      %c0_28 = arith.constant 0 : index
      %c0_29 = arith.constant 0 : index
      %57 = vector.load %arg8[%c0_28, %c0_29] : memref<1x128xf32, #tpu.memory_space<vmem>>, vector<1x128xf32>
      %c0_30 = arith.constant 0 : index
      %c0_31 = arith.constant 0 : index
      %58 = vector.load %arg7[%c0_30, %c0_31] : memref<1x128xf32, #tpu.memory_space<vmem>>, vector<1x128xf32>
      %cst_32 = arith.constant 0.000000e+00 : f32
      %59 = vector.broadcast %cst_32 : f32 to vector<1x128xf32>
      %60 = arith.maximumf %58, %59 : vector<1x128xf32>
      %61 = vector.broadcast %cst_32 : f32 to vector<1x128xf32>
      %62 = arith.subf %58, %61 : vector<1x128xf32>
      %63 = arith.cmpf one, %62, %62 : vector<1x128xf32>
      %64 = vector.broadcast %cst_32 : f32 to vector<1x128xf32>
      %65 = arith.addf %58, %64 : vector<1x128xf32>
      %66 = math.absf %62 : vector<1x128xf32>
      %cst_33 = arith.constant 0.000000e+00 : f32
      %67 = vector.broadcast %cst_33 : f32 to vector<1x128xf32>
      %68 = arith.subf %67, %66 : vector<1x128xf32>
      %69 = math.exp %68 : vector<1x128xf32>
      %70 = math.log1p %69 : vector<1x128xf32>
      %71 = arith.addf %60, %70 : vector<1x128xf32>
      %72 = arith.select %63, %65, %71 : vector<1x128xi1>, vector<1x128xf32>
      %c0_34 = arith.constant 0 : index
      %c0_35 = arith.constant 0 : index
      %73 = vector.load %arg6[%c0_34, %c0_35] : memref<1x128xf32, #tpu.memory_space<vmem>>, vector<1x128xf32>
      %74 = arith.mulf %72, %57 : vector<1x128xf32>
      %75 = arith.addf %73, %74 : vector<1x128xf32>
      %c0_36 = arith.constant 0 : index
      %c0_37 = arith.constant 0 : index
      %76 = vector.load %arg13[%c0_36, %c0_37] : memref<1x128xf32, #tpu.memory_space<vmem>>, vector<1x128xf32>
      tpu.vector_store %arg13[%c0_36, %c0_37], %75 {strides = array<i32>} : memref<1x128xf32, #tpu.memory_space<vmem>>, vector<1x128xf32>,
      %77 = arith.mulf %75, %75 : vector<1x128xf32>
      %78 = vector.shape_cast %77 : vector<1x128xf32> to vector<1x1x128xf32>
      %cst_38 = arith.constant dense<0.000000e+00> : vector<1xf32>
      %79 = vector.multi_reduction <add>, %78, %cst_38 [1, 2] : vector<1x1x128xf32> to vector<1xf32>
      %80 = vector.shape_cast %79 : vector<1xf32> to vector<1x1x1xf32>
      %81 = vector.extract %80[0, 0, 0] : f32 from vector<1x1x1xf32>
      %cst_39 = arith.constant -5.000000e-01 : f32
      %82 = arith.mulf %cst_39, %81 : f32
      %c0_40 = arith.constant 0 : index
      %83 = memref.load %arg14[%c0_40] : memref<2xf32, #tpu.memory_space<smem>>
      memref.store %82, %arg14[%c0_40] : memref<2xf32, #tpu.memory_space<smem>>
      %84 = math.log %72 : vector<1x128xf32>
      %85 = vector.shape_cast %84 : vector<1x128xf32> to vector<1x1x128xf32>
      %cst_41 = arith.constant dense<0.000000e+00> : vector<1xf32>
      %86 = vector.multi_reduction <add>, %85, %cst_41 [1, 2] : vector<1x1x128xf32> to vector<1xf32>
      %87 = vector.shape_cast %86 : vector<1xf32> to vector<1x1x1xf32>
      %88 = vector.extract %87[0, 0, 0] : f32 from vector<1x1x1xf32>
      %cst_42 = arith.constant 0.000000e+00 : f32
      %89 = arith.subf %cst_42, %88 : f32
      %90 = arith.mulf %57, %57 : vector<1x128xf32>
      %91 = vector.shape_cast %90 : vector<1x128xf32> to vector<1x1x128xf32>
      %cst_43 = arith.constant dense<0.000000e+00> : vector<1xf32>
      %92 = vector.multi_reduction <add>, %91, %cst_43 [1, 2] : vector<1x1x128xf32> to vector<1xf32>
      %93 = vector.shape_cast %92 : vector<1xf32> to vector<1x1x1xf32>
      %94 = vector.extract %93[0, 0, 0] : f32 from vector<1x1x1xf32>
      %cst_44 = arith.constant 5.000000e-01 : f32
      %95 = arith.mulf %cst_44, %94 : f32
      %96 = arith.subf %89, %95 : f32
      %c1_45 = arith.constant 1 : index
      %97 = memref.load %arg14[%c1_45] : memref<2xf32, #tpu.memory_space<smem>>
      memref.store %96, %arg14[%c1_45] : memref<2xf32, #tpu.memory_space<smem>>
    } else {
    }
    %c0_7 = arith.constant 0 : index
    %c0_8 = arith.constant 0 : index
    %22 = vector.load %arg12[%c0_7, %c0_8] : memref<8x128xf32, #tpu.memory_space<vmem>>, vector<8x128xf32>
    %c0_9 = arith.constant 0 : index
    %c0_10 = arith.constant 0 : index
    %23 = vector.load %arg2[%c0_9, %c0_10] : memref<8x128xf32, #tpu.memory_space<vmem>>, vector<8x128xf32>
    %cst_11 = arith.constant dense<0.000000e+00> : vector<8x128xf32>
    %24 = tpu.matmul %23, %18, %cst_11 {dimension_numbers = #tpu.dot_dimension_numbers<[1], [0], [0], [1], [0, 0, 1, 1], [], []>} : vector<8x128xf32>, vector<128x128xf32>, vector<8x128xf32> -> vector<8x128xf32>
    %25 = arith.addf %22, %24 : vector<8x128xf32>
    %c0_12 = arith.constant 0 : index
    %c0_13 = arith.constant 0 : index
    %26 = vector.load %arg12[%c0_12, %c0_13] : memref<8x128xf32, #tpu.memory_space<vmem>>, vector<8x128xf32>
    tpu.vector_store %arg12[%c0_12, %c0_13], %25 {strides = array<i32>} : memref<8x128xf32, #tpu.memory_space<vmem>>, vector<8x128xf32>,
    %c0_14 = arith.constant 0 : index
    %27 = memref.load %arg14[%c0_14] : memref<2xf32, #tpu.memory_space<smem>>
    %28 = arith.mulf %18, %18 : vector<128x128xf32>
    %29 = vector.shape_cast %28 : vector<128x128xf32> to vector<1x128x128xf32>
    %cst_15 = arith.constant dense<0.000000e+00> : vector<1xf32>
    %30 = vector.multi_reduction <add>, %29, %cst_15 [1, 2] : vector<1x128x128xf32> to vector<1xf32>
    %31 = vector.shape_cast %30 : vector<1xf32> to vector<1x1x1xf32>
    %32 = vector.extract %31[0, 0, 0] : f32 from vector<1x1x1xf32>
    %cst_16 = arith.constant -5.000000e-01 : f32
    %33 = arith.mulf %cst_16, %32 : f32
    %34 = arith.addf %27, %33 : f32
    %c0_17 = arith.constant 0 : index
    %35 = memref.load %arg14[%c0_17] : memref<2xf32, #tpu.memory_space<smem>>
    memref.store %34, %arg14[%c0_17] : memref<2xf32, #tpu.memory_space<smem>>
    %c1 = arith.constant 1 : index
    %36 = memref.load %arg14[%c1] : memref<2xf32, #tpu.memory_space<smem>>
    %37 = math.log %15 : vector<128x128xf32>
    %38 = vector.shape_cast %37 : vector<128x128xf32> to vector<1x128x128xf32>
    %cst_18 = arith.constant dense<0.000000e+00> : vector<1xf32>
    %39 = vector.multi_reduction <add>, %38, %cst_18 [1, 2] : vector<1x128x128xf32> to vector<1xf32>
    %40 = vector.shape_cast %39 : vector<1xf32> to vector<1x1x1xf32>
    %41 = vector.extract %40[0, 0, 0] : f32 from vector<1x1x1xf32>
    %cst_19 = arith.constant 0.000000e+00 : f32
    %42 = arith.subf %cst_19, %41 : f32
    %43 = arith.mulf %0, %0 : vector<128x128xf32>
    %44 = vector.shape_cast %43 : vector<128x128xf32> to vector<1x128x128xf32>
    %cst_20 = arith.constant dense<0.000000e+00> : vector<1xf32>
    %45 = vector.multi_reduction <add>, %44, %cst_20 [1, 2] : vector<1x128x128xf32> to vector<1xf32>
    %46 = vector.shape_cast %45 : vector<1xf32> to vector<1x1x1xf32>
    %47 = vector.extract %46[0, 0, 0] : f32 from vector<1x1x1xf32>
    %cst_21 = arith.constant 5.000000e-01 : f32
    %48 = arith.mulf %cst_21, %47 : f32
    %49 = arith.subf %42, %48 : f32
    %50 = arith.addf %36, %49 : f32
    %c1_22 = arith.constant 1 : index
    %51 = memref.load %arg14[%c1_22] : memref<2xf32, #tpu.memory_space<smem>>
    memref.store %50, %arg14[%c1_22] : memref<2xf32, #tpu.memory_space<smem>>
    %c0_i32_23 = arith.constant 0 : i32
    %52 = arith.cmpi eq, %arg1, %c0_i32_23 : i32
    %53 = arith.extui %52 : i1 to i32
    %c0_i32_24 = arith.constant 0 : i32
    %54 = arith.cmpi ne, %53, %c0_i32_24 : i32
    scf.if %54 {
      %c0_25 = arith.constant 0 : index
      %c0_26 = arith.constant 0 : index
      %55 = vector.load %arg12[%c0_25, %c0_26] : memref<8x128xf32, #tpu.memory_space<vmem>>, vector<8x128xf32>
      %c0_27 = arith.constant 0 : index
      %c0_28 = arith.constant 0 : index
      %56 = vector.load %arg13[%c0_27, %c0_28] : memref<1x128xf32, #tpu.memory_space<vmem>>, vector<1x128xf32>
      %57 = vector.broadcast %56 : vector<1x128xf32> to vector<8x128xf32>
      %58 = arith.addf %55, %57 : vector<8x128xf32>
      %c0_29 = arith.constant 0 : index
      %c0_30 = arith.constant 0 : index
      %59 = vector.load %arg9[%c0_29, %c0_30] : memref<8x128xf32, #tpu.memory_space<vmem>>, vector<8x128xf32>
      tpu.vector_store %arg9[%c0_29, %c0_30], %58 {strides = array<i32>} : memref<8x128xf32, #tpu.memory_space<vmem>>, vector<8x128xf32>,
      %c0_31 = arith.constant 0 : index
      %60 = memref.load %arg14[%c0_31] : memref<2xf32, #tpu.memory_space<smem>>
      %c0_32 = arith.constant 0 : index
      %c0_33 = arith.constant 0 : index
      %61 = memref.load %arg10[%c0_32, %c0_33] : memref<1x1xf32, #tpu.memory_space<smem>>
      memref.store %60, %arg10[%c0_32, %c0_33] : memref<1x1xf32, #tpu.memory_space<smem>>
      %c1_34 = arith.constant 1 : index
      %62 = memref.load %arg14[%c1_34] : memref<2xf32, #tpu.memory_space<smem>>
      %c0_35 = arith.constant 0 : index
      %c0_36 = arith.constant 0 : index
      %63 = memref.load %arg11[%c0_35, %c0_36] : memref<1x1xf32, #tpu.memory_space<smem>>
      memref.store %62, %arg11[%c0_35, %c0_36] : memref<1x1xf32, #tpu.memory_space<smem>>
    } else {
    }
    return
  }
  func.func @transform_0(%arg0: i32, %arg1: i32) -> (i32, i32) {
    %c0_i32 = arith.constant 0 : i32
    %c0_i32_0 = arith.constant 0 : i32
    return %c0_i32, %arg1 : i32, i32
  }
  func.func @transform_1(%arg0: i32, %arg1: i32) -> (i32, i32) {
    %c0_i32 = arith.constant 0 : i32
    return %arg1, %arg0 : i32, i32
  }
  func.func @transform_2(%arg0: i32, %arg1: i32) -> (i32, i32) {
    %c0_i32 = arith.constant 0 : i32
    return %arg1, %arg0 : i32, i32
  }
  func.func @transform_3(%arg0: i32, %arg1: i32) -> (i32, i32) {
    %c0_i32 = arith.constant 0 : i32
    return %arg1, %arg0 : i32, i32
  }
  func.func @transform_4(%arg0: i32, %arg1: i32) -> (i32, i32) {
    %c0_i32 = arith.constant 0 : i32
    %c0_i32_0 = arith.constant 0 : i32
    return %c0_i32, %arg0 : i32, i32
  }
  func.func @transform_5(%arg0: i32, %arg1: i32) -> (i32, i32) {
    %c0_i32 = arith.constant 0 : i32
    %c0_i32_0 = arith.constant 0 : i32
    return %c0_i32, %arg0 : i32, i32
  }
  func.func @transform_6(%arg0: i32, %arg1: i32) -> (i32, i32) {
    %c0_i32 = arith.constant 0 : i32
    %c0_i32_0 = arith.constant 0 : i32
    return %c0_i32, %arg0 : i32, i32
  }
  func.func @transform_7(%arg0: i32, %arg1: i32) -> (i32, i32) {
    %c0_i32 = arith.constant 0 : i32
    %c0_i32_0 = arith.constant 0 : i32
    return %c0_i32, %arg0 : i32, i32
  }
  func.func @transform_8(%arg0: i32, %arg1: i32) -> (i32, i32) {
    %c0_i32 = arith.constant 0 : i32
    %c0_i32_0 = arith.constant 0 : i32
    return %arg0, %c0_i32 : i32, i32
  }
  func.func @transform_9(%arg0: i32, %arg1: i32) -> (i32, i32) {
    %c0_i32 = arith.constant 0 : i32
    %c0_i32_0 = arith.constant 0 : i32
    return %arg0, %c0_i32 : i32, i32
  }
}

</mosaic_0001>

<llo_original>
// kernel: tpu_custom_call.1
$region0: #{tpu_custom_call.1}
  #allocation0 [shape = 'u32[]', space=smem, size = 0x4, offset = 0x4, fixed_abs, tag = 'smem constant byte address 0x4 - core index']
  #allocation1 [shape = 'u32[144,128]{1,0:T(1,128)}', space=vmem, size = 0x12000, scoped, tag = 'internal scratch']
  #allocation2 [shape = 'f32[8,128]{1,0:T(8,128)}', space=vmem, size = 0x1000, scoped, tag = 'scratch operand']
  #allocation3 [shape = 'f32[1,128]{1,0:T(1,128)}', space=vmem, size = 0x200, scoped, tag = 'scratch operand']
  #allocation4 [shape = 'f32[2]{0:T(128)}', space=smem, size = 0x200, scoped, tag = 'scratch operand']
  %s0 = inlined_call_operand.hbm [shape: f32[8,128], index: 0, kind: input, shape index: {}]
  %s1 = inlined_call_operand.hbm [shape: f32[128,128], index: 1, kind: input, shape index: {}]
  %s2 = inlined_call_operand.hbm [shape: f32[128,128], index: 2, kind: input, shape index: {}]
  %s3 = inlined_call_operand.hbm [shape: f32[128,128], index: 3, kind: input, shape index: {}]
  %s4 = inlined_call_operand.vmem [shape: f32[1,128], index: 4, kind: input, shape index: {}]
  %s5 = inlined_call_operand.vmem [shape: f32[1,128], index: 5, kind: input, shape index: {}]
  %s6 = inlined_call_operand.vmem [shape: f32[1,128], index: 6, kind: input, shape index: {}]
  %s7 = inlined_call_operand.hbm [shape: f32[8,128], index: 7, kind: output, shape index: {0}]
  %s8 = inlined_call_operand.hbm [shape: f32[1,1], index: 8, kind: output, shape index: {1}]
  %s9 = inlined_call_operand.hbm [shape: f32[1,1], index: 9, kind: output, shape index: {2}]
  %10 = xla_tuple %s7, %s8, %s9
  %s11 = sld [smem:[#allocation0]]
  $region78: #{tpu_custom_call.1} parent=0
    _
  %s13 = ssub.s32 1, %s11
  %s14 = scalar_select 0, %s13, %s11
  $region1: #{tpu_custom_call.1} parent=0
    #allocation5 [shape = 'u8[4096]{0}', space=vmem, size = 0x1000, scoped, tag = 'input window, operand 0, single buffered']
    #allocation6 [shape = 's32[1]{0}', space=sflag, size = 0x4, scoped, tag = 'scoped memory for tpu_custom_call.1']
    #allocation7 [shape = 's32[1]{0}', space=sflag, size = 0x4, scoped, tag = 'scoped memory for tpu_custom_call.1']
    #allocation8 [shape = 's32[1]{0}', space=sflag, size = 0x4, scoped, tag = 'scoped memory for tpu_custom_call.1']
    #allocation9 [shape = 'u8[65536]{0}', space=vmem, size = 0x10000, scoped, tag = 'input window, operand 1, single buffered']
    #allocation10 [shape = 's32[1]{0}', space=sflag, size = 0x4, scoped, tag = 'scoped memory for tpu_custom_call.1']
    #allocation11 [shape = 'u8[65536]{0}', space=vmem, size = 0x10000, scoped, tag = 'input window, operand 2, single buffered']
    #allocation12 [shape = 'u8[65536]{0}', space=vmem, size = 0x10000, scoped, tag = 'input window, operand 3, single buffered']
    #allocation13 [shape = 's32[1]{0}', space=sflag, size = 0x4, scoped, tag = 'scoped memory for tpu_custom_call.1']
    #allocation14 [shape = 'u8[4096]{0}', space=vmem, size = 0x1000, scoped, tag = 'output window, operand 0, single buffered']
    #allocation15 [shape = 'u8[512]{0}', space=smem, size = 0x200, scoped, tag = 'output window, operand 1, single buffered']
    #allocation16 [shape = 'u8[512]{0}', space=smem, size = 0x200, scoped, tag = 'output window, operand 2, single buffered']
    #allocation17 [shape = 's32[1]{0}', space=sflag, size = 0x4, scoped, tag = 'scoped memory for tpu_custom_call.1']
    %15 = vsyncpa [#allocation6], 0
    %16 = vsyncpa [#allocation10], 0
    %17 = vsyncpa [#allocation13], 0
    %18 = vsyncpa [#allocation7], 0
    %19 = vsyncpa [#allocation8], 0
    %20 = vsyncpa [#allocation17], 0
    // Predicated region
    $region2: #{tpu_custom_call.1} parent=1 // pred_check
      _
    $region3: #{tpu_custom_call.1} parent=1 // pred_check_branch
      %22 = sbr.rel (0) target = $region5
    $region4: #{tpu_custom_call.1} parent=1 // pred_region
      %s24 = ssub.s32 128, 128
      %25 = vsyncadd [#allocation6], %s24
      %s27 = sshll.u32 [#allocation5], 4
      %s28 = int_to_ptr.vmem [resolvable:$true] %s27
      %30 = dma.hbm_to_vmem [thread:$0]  %s0, 128, %s28, [#allocation6]
    $region5: #{tpu_custom_call.1} parent=1 // pred_fallthru
      _
    // Predicated region
    $region6: #{tpu_custom_call.1} parent=1 // pred_check
      _
    $region7: #{tpu_custom_call.1} parent=1 // pred_check_branch
      %32 = sbr.rel (0) target = $region9
    $region8: #{tpu_custom_call.1} parent=1 // pred_region
      %s34 = ssub.s32 2048, 2048
      %35 = vsyncadd [#allocation10], %s34
      %s36 = sshll.u32 [#allocation9], 4
      %s37 = int_to_ptr.vmem [resolvable:$true] %s36
      %42 = dma.hbm_to_vmem [thread:$0]  %s1, 2048, %s37, [#allocation10], 128, 128, 8
    $region9: #{tpu_custom_call.1} parent=1 // pred_fallthru
      _
    // Predicated region
    $region10: #{tpu_custom_call.1} parent=1 // pred_check
      _
    $region11: #{tpu_custom_call.1} parent=1 // pred_check_branch
      %44 = sbr.rel (0) target = $region13
    $region12: #{tpu_custom_call.1} parent=1 // pred_region
      %s46 = ssub.s32 2048, 2048
      %47 = vsyncadd [#allocation10], %s46
      %s48 = sshll.u32 [#allocation11], 4
      %s49 = int_to_ptr.vmem [resolvable:$true] %s48
      %54 = dma.hbm_to_vmem [thread:$0]  %s2, 2048, %s49, [#allocation10], 128, 128, 8
    $region13: #{tpu_custom_call.1} parent=1 // pred_fallthru
      _
    // Predicated region
    $region14: #{tpu_custom_call.1} parent=1 // pred_check
      _
    $region15: #{tpu_custom_call.1} parent=1 // pred_check_branch
      %56 = sbr.rel (0) target = $region17
    $region16: #{tpu_custom_call.1} parent=1 // pred_region
      %s58 = ssub.s32 2048, 2048
      %59 = vsyncadd [#allocation13], %s58
      %s60 = sshll.u32 [#allocation12], 4
      %s61 = int_to_ptr.vmem [resolvable:$true] %s60
      %66 = dma.hbm_to_vmem [thread:$0]  %s3, 2048, %s61, [#allocation13], 128, 128, 8
    $region17: #{tpu_custom_call.1} parent=1 // pred_fallthru
      _
    // Predicated region
    $region18: #{tpu_custom_call.1} parent=1 // pred_check
      _
    $region19: #{tpu_custom_call.1} parent=1 // pred_check_branch
      %68 = sbr.rel (0) target = $region21
    $region20: #{tpu_custom_call.1} parent=1 // pred_region
      _
    $region21: #{tpu_custom_call.1} parent=1 // pred_fallthru
      _
    // Predicated region
    $region22: #{tpu_custom_call.1} parent=1 // pred_check
      _
    $region23: #{tpu_custom_call.1} parent=1 // pred_check_branch
      %70 = sbr.rel (0) target = $region25
    $region24: #{tpu_custom_call.1} parent=1 // pred_region
      _
    $region25: #{tpu_custom_call.1} parent=1 // pred_fallthru
      _
    // Predicated region
    $region26: #{tpu_custom_call.1} parent=1 // pred_check
      _
    $region27: #{tpu_custom_call.1} parent=1 // pred_check_branch
      %72 = sbr.rel (0) target = $region29
    $region28: #{tpu_custom_call.1} parent=1 // pred_region
      _
    $region29: #{tpu_custom_call.1} parent=1 // pred_fallthru
      _
    // Predicated region
    $region30: #{tpu_custom_call.1} parent=1 // pred_check
      _
    $region31: #{tpu_custom_call.1} parent=1 // pred_check_branch
      %74 = sbr.rel (0) target = $region33
    $region32: #{tpu_custom_call.1} parent=1 // pred_region
      %75 = dma.done [#allocation6], 128
    $region33: #{tpu_custom_call.1} parent=1 // pred_fallthru
      _
    // Predicated region
    $region34: #{tpu_custom_call.1} parent=1 // pred_check
      _
    $region35: #{tpu_custom_call.1} parent=1 // pred_check_branch
      %77 = sbr.rel (0) target = $region37
    $region36: #{tpu_custom_call.1} parent=1 // pred_region
      %78 = dma.done [#allocation10], 2048
    $region37: #{tpu_custom_call.1} parent=1 // pred_fallthru
      _
    // Predicated region
    $region38: #{tpu_custom_call.1} parent=1 // pred_check
      _
    $region39: #{tpu_custom_call.1} parent=1 // pred_check_branch
      %80 = sbr.rel (0) target = $region41
    $region40: #{tpu_custom_call.1} parent=1 // pred_region
      %81 = dma.done [#allocation10], 2048
    $region41: #{tpu_custom_call.1} parent=1 // pred_fallthru
      _
    // Predicated region
    $region42: #{tpu_custom_call.1} parent=1 // pred_check
      _
    $region43: #{tpu_custom_call.1} parent=1 // pred_check_branch
      %83 = sbr.rel (0) target = $region45
    $region44: #{tpu_custom_call.1} parent=1 // pred_region
      %84 = dma.done [#allocation13], 2048
    $region45: #{tpu_custom_call.1} parent=1 // pred_fallthru
      _
    %v85 = vld [vmem:[#allocation12] sm:$0xff]
    %v86 = vld [vmem:[#allocation12 + $0x8] sm:$0xff]
    %v87 = vld [vmem:[#allocation12 + $0x10] sm:$0xff]
    %v88 = vld [vmem:[#allocation12 + $0x18] sm:$0xff]
    %v89 = vld [vmem:[#allocation12 + $0x20] sm:$0xff]
    %v90 = vld [vmem:[#allocation12 + $0x28] sm:$0xff]
    %v91 = vld [vmem:[#allocation12 + $0x30] sm:$0xff]
    %v92 = vld [vmem:[#allocation12 + $0x38] sm:$0xff]
    %v93 = vld [vmem:[#allocation12 + $0x40] sm:$0xff]
    %v94 = vld [vmem:[#allocation12 + $0x48] sm:$0xff]
    %v95 = vld [vmem:[#allocation12 + $0x50] sm:$0xff]
    %v96 = vld [vmem:[#allocation12 + $0x58] sm:$0xff]
    %v97 = vld [vmem:[#allocation12 + $0x60] sm:$0xff]
    %v98 = vld [vmem:[#allocation12 + $0x68] sm:$0xff]
    %v99 = vld [vmem:[#allocation12 + $0x70] sm:$0xff]
    %v100 = vld [vmem:[#allocation12 + $0x78] sm:$0xff]
    %v101 = vld [vmem:[#allocation11] sm:$0xff]
    %v102 = vld [vmem:[#allocation11 + $0x8] sm:$0xff]
    %v103 = vld [vmem:[#allocation11 + $0x10] sm:$0xff]
    %v104 = vld [vmem:[#allocation11 + $0x18] sm:$0xff]
    %v105 = vld [vmem:[#allocation11 + $0x20] sm:$0xff]
    %v106 = vld [vmem:[#allocation11 + $0x28] sm:$0xff]
    %v107 = vld [vmem:[#allocation11 + $0x30] sm:$0xff]
    %v108 = vld [vmem:[#allocation11 + $0x38] sm:$0xff]
    %v109 = vld [vmem:[#allocation11 + $0x40] sm:$0xff]
    %v110 = vld [vmem:[#allocation11 + $0x48] sm:$0xff]
    %v111 = vld [vmem:[#allocation11 + $0x50] sm:$0xff]
    %v112 = vld [vmem:[#allocation11 + $0x58] sm:$0xff]
    %v113 = vld [vmem:[#allocation11 + $0x60] sm:$0xff]
    %v114 = vld [vmem:[#allocation11 + $0x68] sm:$0xff]
    %v115 = vld [vmem:[#allocation11 + $0x70] sm:$0xff]
    %v116 = vld [vmem:[#allocation11 + $0x78] sm:$0xff]
    %v117 = vmax.f32 %v101, 0.0
    %v118 = vmax.f32 %v102, 0.0
    %v119 = vmax.f32 %v103, 0.0
    %v120 = vmax.f32 %v104, 0.0
    %v121 = vmax.f32 %v105, 0.0
    %v122 = vmax.f32 %v106, 0.0
    %v123 = vmax.f32 %v107, 0.0
    %v124 = vmax.f32 %v108, 0.0
    %v125 = vmax.f32 %v109, 0.0
    %v126 = vmax.f32 %v110, 0.0
    %v127 = vmax.f32 %v111, 0.0
    %v128 = vmax.f32 %v112, 0.0
    %v129 = vmax.f32 %v113, 0.0
    %v130 = vmax.f32 %v114, 0.0
    %v131 = vmax.f32 %v115, 0.0
    %v132 = vmax.f32 %v116, 0.0
    %vm133 = vcmp.ne.f32.partialorder %v101, %v101
    %vm134 = vcmp.ne.f32.partialorder %v102, %v102
    %vm135 = vcmp.ne.f32.partialorder %v103, %v103
    %vm136 = vcmp.ne.f32.partialorder %v104, %v104
    %vm137 = vcmp.ne.f32.partialorder %v105, %v105
    %vm138 = vcmp.ne.f32.partialorder %v106, %v106
    %vm139 = vcmp.ne.f32.partialorder %v107, %v107
    %vm140 = vcmp.ne.f32.partialorder %v108, %v108
    %vm141 = vcmp.ne.f32.partialorder %v109, %v109
    %vm142 = vcmp.ne.f32.partialorder %v110, %v110
    %vm143 = vcmp.ne.f32.partialorder %v111, %v111
    %vm144 = vcmp.ne.f32.partialorder %v112, %v112
    %vm145 = vcmp.ne.f32.partialorder %v113, %v113
    %vm146 = vcmp.ne.f32.partialorder %v114, %v114
    %vm147 = vcmp.ne.f32.partialorder %v115, %v115
    %vm148 = vcmp.ne.f32.partialorder %v116, %v116
    %v149 = vadd.f32 %v101, 0.0
    %v150 = vadd.f32 %v102, 0.0
    %v151 = vadd.f32 %v103, 0.0
    %v152 = vadd.f32 %v104, 0.0
    %v153 = vadd.f32 %v105, 0.0
    %v154 = vadd.f32 %v106, 0.0
    %v155 = vadd.f32 %v107, 0.0
    %v156 = vadd.f32 %v108, 0.0
    %v157 = vadd.f32 %v109, 0.0
    %v158 = vadd.f32 %v110, 0.0
    %v159 = vadd.f32 %v111, 0.0
    %v160 = vadd.f32 %v112, 0.0
    %v161 = vadd.f32 %v113, 0.0
    %v162 = vadd.f32 %v114, 0.0
    %v163 = vadd.f32 %v115, 0.0
    %v164 = vadd.f32 %v116, 0.0
    %v165 = vand.u32 2147483647, %v101
    %v166 = vand.u32 2147483647, %v102
    %v167 = vand.u32 2147483647, %v103
    %v168 = vand.u32 2147483647, %v104
    %v169 = vand.u32 2147483647, %v105
    %v170 = vand.u32 2147483647, %v106
    %v171 = vand.u32 2147483647, %v107
    %v172 = vand.u32 2147483647, %v108
    %v173 = vand.u32 2147483647, %v109
    %v174 = vand.u32 2147483647, %v110
    %v175 = vand.u32 2147483647, %v111
    %v176 = vand.u32 2147483647, %v112
    %v177 = vand.u32 2147483647, %v113
    %v178 = vand.u32 2147483647, %v114
    %v179 = vand.u32 2147483647, %v115
    %v180 = vand.u32 2147483647, %v116
    %v181 = vsub.f32 0.0, %v165
    %v182 = vsub.f32 0.0, %v166
    %v183 = vsub.f32 0.0, %v167
    %v184 = vsub.f32 0.0, %v168
    %v185 = vsub.f32 0.0, %v169
    %v186 = vsub.f32 0.0, %v170
    %v187 = vsub.f32 0.0, %v171
    %v188 = vsub.f32 0.0, %v172
    %v189 = vsub.f32 0.0, %v173
    %v190 = vsub.f32 0.0, %v174
    %v191 = vsub.f32 0.0, %v175
    %v192 = vsub.f32 0.0, %v176
    %v193 = vsub.f32 0.0, %v177
    %v194 = vsub.f32 0.0, %v178
    %v195 = vsub.f32 0.0, %v179
    %v196 = vsub.f32 0.0, %v180
    %v197 = vmul.f32 %v181, 1.442695
    %v198 = vpow.pop %v197
    %v199 = vmul.f32 %v182, 1.442695
    %v200 = vpow.pop %v199
    %v201 = vmul.f32 %v183, 1.442695
    %v202 = vpow.pop %v201
    %v203 = vmul.f32 %v184, 1.442695
    %v204 = vpow.pop %v203
    %v205 = vmul.f32 %v185, 1.442695
    %v206 = vpow.pop %v205
    %v207 = vmul.f32 %v186, 1.442695
    %v208 = vpow.pop %v207
    %v209 = vmul.f32 %v187, 1.442695
    %v210 = vpow.pop %v209
    %v211 = vmul.f32 %v188, 1.442695
    %v212 = vpow.pop %v211
    %v213 = vmul.f32 %v189, 1.442695
    %v214 = vpow.pop %v213
    %v215 = vmul.f32 %v190, 1.442695
    %v216 = vpow.pop %v215
    %v217 = vmul.f32 %v191, 1.442695
    %v218 = vpow.pop %v217
    %v219 = vmul.f32 %v192, 1.442695
    %v220 = vpow.pop %v219
    %v221 = vmul.f32 %v193, 1.442695
    %v222 = vpow.pop %v221
    %v223 = vmul.f32 %v194, 1.442695
    %v224 = vpow.pop %v223
    %v225 = vmul.f32 %v195, 1.442695
    %v226 = vpow.pop %v225
    %v227 = vmul.f32 %v196, 1.442695
    %v228 = vpow.pop %v227
    %v229 = vadd.f32 %v198, 1.0
    %v230 = vlog2.pop %v229
    %v231 = vmul.f32 %v230, 0.6931472
    %v232 = vmul.f32 -0.5, %v198
    %v233 = vadd.f32 %v232, 1.0
    %v234 = vmul.f32 %v233, %v198
    %v235 = vand.u32 2147483647, %v198
    %vm236 = vcmp.lt.f32.partialorder %v235, 0.0004427343
    %v237 = vsel %vm236, %v234, %v231
    %v238 = vadd.f32 %v200, 1.0
    %v239 = vlog2.pop %v238
    %v240 = vmul.f32 %v239, 0.6931472
    %v241 = vmul.f32 -0.5, %v200
    %v242 = vadd.f32 %v241, 1.0
    %v243 = vmul.f32 %v242, %v200
    %v244 = vand.u32 2147483647, %v200
    %vm245 = vcmp.lt.f32.partialorder %v244, 0.0004427343
    %v246 = vsel %vm245, %v243, %v240
    %v247 = vadd.f32 %v202, 1.0
    %v248 = vlog2.pop %v247
    %v249 = vmul.f32 %v248, 0.6931472
    %v250 = vmul.f32 -0.5, %v202
    %v251 = vadd.f32 %v250, 1.0
    %v252 = vmul.f32 %v251, %v202
    %v253 = vand.u32 2147483647, %v202
    %vm254 = vcmp.lt.f32.partialorder %v253, 0.0004427343
    %v255 = vsel %vm254, %v252, %v249
    %v256 = vadd.f32 %v204, 1.0
    %v257 = vlog2.pop %v256
    %v258 = vmul.f32 %v257, 0.6931472
    %v259 = vmul.f32 -0.5, %v204
    %v260 = vadd.f32 %v259, 1.0
    %v261 = vmul.f32 %v260, %v204
    %v262 = vand.u32 2147483647, %v204
    %vm263 = vcmp.lt.f32.partialorder %v262, 0.0004427343
    %v264 = vsel %vm263, %v261, %v258
    %v265 = vadd.f32 %v206, 1.0
    %v266 = vlog2.pop %v265
    %v267 = vmul.f32 %v266, 0.6931472
    %v268 = vmul.f32 -0.5, %v206
    %v269 = vadd.f32 %v268, 1.0
    %v270 = vmul.f32 %v269, %v206
    %v271 = vand.u32 2147483647, %v206
    %vm272 = vcmp.lt.f32.partialorder %v271, 0.0004427343
    %v273 = vsel %vm272, %v270, %v267
    %v274 = vadd.f32 %v208, 1.0
    %v275 = vlog2.pop %v274
    %v276 = vmul.f32 %v275, 0.6931472
    %v277 = vmul.f32 -0.5, %v208
    %v278 = vadd.f32 %v277, 1.0
    %v279 = vmul.f32 %v278, %v208
    %v280 = vand.u32 2147483647, %v208
    %vm281 = vcmp.lt.f32.partialorder %v280, 0.0004427343
    %v282 = vsel %vm281, %v279, %v276
    %v283 = vadd.f32 %v210, 1.0
    %v284 = vlog2.pop %v283
    %v285 = vmul.f32 %v284, 0.6931472
    %v286 = vmul.f32 -0.5, %v210
    %v287 = vadd.f32 %v286, 1.0
    %v288 = vmul.f32 %v287, %v210
    %v289 = vand.u32 2147483647, %v210
    %vm290 = vcmp.lt.f32.partialorder %v289, 0.0004427343
    %v291 = vsel %vm290, %v288, %v285
    %v292 = vadd.f32 %v212, 1.0
    %v293 = vlog2.pop %v292
    %v294 = vmul.f32 %v293, 0.6931472
    %v295 = vmul.f32 -0.5, %v212
    %v296 = vadd.f32 %v295, 1.0
    %v297 = vmul.f32 %v296, %v212
    %v298 = vand.u32 2147483647, %v212
    %vm299 = vcmp.lt.f32.partialorder %v298, 0.0004427343
    %v300 = vsel %vm299, %v297, %v294
    %v301 = vadd.f32 %v214, 1.0
    %v302 = vlog2.pop %v301
    %v303 = vmul.f32 %v302, 0.6931472
    %v304 = vmul.f32 -0.5, %v214
    %v305 = vadd.f32 %v304, 1.0
    %v306 = vmul.f32 %v305, %v214
    %v307 = vand.u32 2147483647, %v214
    %vm308 = vcmp.lt.f32.partialorder %v307, 0.0004427343
    %v309 = vsel %vm308, %v306, %v303
    %v310 = vadd.f32 %v216, 1.0
    %v311 = vlog2.pop %v310
    %v312 = vmul.f32 %v311, 0.6931472
    %v313 = vmul.f32 -0.5, %v216
    %v314 = vadd.f32 %v313, 1.0
    %v315 = vmul.f32 %v314, %v216
    %v316 = vand.u32 2147483647, %v216
    %vm317 = vcmp.lt.f32.partialorder %v316, 0.0004427343
    %v318 = vsel %vm317, %v315, %v312
    %v319 = vadd.f32 %v218, 1.0
    %v320 = vlog2.pop %v319
    %v321 = vmul.f32 %v320, 0.6931472
    %v322 = vmul.f32 -0.5, %v218
    %v323 = vadd.f32 %v322, 1.0
    %v324 = vmul.f32 %v323, %v218
    %v325 = vand.u32 2147483647, %v218
    %vm326 = vcmp.lt.f32.partialorder %v325, 0.0004427343
    %v327 = vsel %vm326, %v324, %v321
    %v328 = vadd.f32 %v220, 1.0
    %v329 = vlog2.pop %v328
    %v330 = vmul.f32 %v329, 0.6931472
    %v331 = vmul.f32 -0.5, %v220
    %v332 = vadd.f32 %v331, 1.0
    %v333 = vmul.f32 %v332, %v220
    %v334 = vand.u32 2147483647, %v220
    %vm335 = vcmp.lt.f32.partialorder %v334, 0.0004427343
    %v336 = vsel %vm335, %v333, %v330
    %v337 = vadd.f32 %v222, 1.0
    %v338 = vlog2.pop %v337
    %v339 = vmul.f32 %v338, 0.6931472
    %v340 = vmul.f32 -0.5, %v222
    %v341 = vadd.f32 %v340, 1.0
    %v342 = vmul.f32 %v341, %v222
    %v343 = vand.u32 2147483647, %v222
    %vm344 = vcmp.lt.f32.partialorder %v343, 0.0004427343
    %v345 = vsel %vm344, %v342, %v339
    %v346 = vadd.f32 %v224, 1.0
    %v347 = vlog2.pop %v346
    %v348 = vmul.f32 %v347, 0.6931472
    %v349 = vmul.f32 -0.5, %v224
    %v350 = vadd.f32 %v349, 1.0
    %v351 = vmul.f32 %v350, %v224
    %v352 = vand.u32 2147483647, %v224
    %vm353 = vcmp.lt.f32.partialorder %v352, 0.0004427343
    %v354 = vsel %vm353, %v351, %v348
    %v355 = vadd.f32 %v226, 1.0
    %v356 = vlog2.pop %v355
    %v357 = vmul.f32 %v356, 0.6931472
    %v358 = vmul.f32 -0.5, %v226
    %v359 = vadd.f32 %v358, 1.0
    %v360 = vmul.f32 %v359, %v226
    %v361 = vand.u32 2147483647, %v226
    %vm362 = vcmp.lt.f32.partialorder %v361, 0.0004427343
    %v363 = vsel %vm362, %v360, %v357
    %v364 = vadd.f32 %v228, 1.0
    %v365 = vlog2.pop %v364
    %v366 = vmul.f32 %v365, 0.6931472
    %v367 = vmul.f32 -0.5, %v228
    %v368 = vadd.f32 %v367, 1.0
    %v369 = vmul.f32 %v368, %v228
    %v370 = vand.u32 2147483647, %v228
    %vm371 = vcmp.lt.f32.partialorder %v370, 0.0004427343
    %v372 = vsel %vm371, %v369, %v366
    %v373 = vadd.f32 %v117, %v237
    %v374 = vadd.f32 %v118, %v246
    %v375 = vadd.f32 %v119, %v255
    %v376 = vadd.f32 %v120, %v264
    %v377 = vadd.f32 %v121, %v273
    %v378 = vadd.f32 %v122, %v282
    %v379 = vadd.f32 %v123, %v291
    %v380 = vadd.f32 %v124, %v300
    %v381 = vadd.f32 %v125, %v309
    %v382 = vadd.f32 %v126, %v318
    %v383 = vadd.f32 %v127, %v327
    %v384 = vadd.f32 %v128, %v336
    %v385 = vadd.f32 %v129, %v345
    %v386 = vadd.f32 %v130, %v354
    %v387 = vadd.f32 %v131, %v363
    %v388 = vadd.f32 %v132, %v372
    %v389 = vsel %vm133, %v149, %v373
    %v390 = vsel %vm134, %v150, %v374
    %v391 = vsel %vm135, %v151, %v375
    %v392 = vsel %vm136, %v152, %v376
    %v393 = vsel %vm137, %v153, %v377
    %v394 = vsel %vm138, %v154, %v378
    %v395 = vsel %vm139, %v155, %v379
    %v396 = vsel %vm140, %v156, %v380
    %v397 = vsel %vm141, %v157, %v381
    %v398 = vsel %vm142, %v158, %v382
    %v399 = vsel %vm143, %v159, %v383
    %v400 = vsel %vm144, %v160, %v384
    %v401 = vsel %vm145, %v161, %v385
    %v402 = vsel %vm146, %v162, %v386
    %v403 = vsel %vm147, %v163, %v387
    %v404 = vsel %vm148, %v164, %v388
    %v405 = vld [vmem:[#allocation9] sm:$0xff]
    %v406 = vld [vmem:[#allocation9 + $0x8] sm:$0xff]
    %v407 = vld [vmem:[#allocation9 + $0x10] sm:$0xff]
    %v408 = vld [vmem:[#allocation9 + $0x18] sm:$0xff]
    %v409 = vld [vmem:[#allocation9 + $0x20] sm:$0xff]
    %v410 = vld [vmem:[#allocation9 + $0x28] sm:$0xff]
    %v411 = vld [vmem:[#allocation9 + $0x30] sm:$0xff]
    %v412 = vld [vmem:[#allocation9 + $0x38] sm:$0xff]
    %v413 = vld [vmem:[#allocation9 + $0x40] sm:$0xff]
    %v414 = vld [vmem:[#allocation9 + $0x48] sm:$0xff]
    %v415 = vld [vmem:[#allocation9 + $0x50] sm:$0xff]
    %v416 = vld [vmem:[#allocation9 + $0x58] sm:$0xff]
    %v417 = vld [vmem:[#allocation9 + $0x60] sm:$0xff]
    %v418 = vld [vmem:[#allocation9 + $0x68] sm:$0xff]
    %v419 = vld [vmem:[#allocation9 + $0x70] sm:$0xff]
    %v420 = vld [vmem:[#allocation9 + $0x78] sm:$0xff]
    %v421 = vmul.f32 %v389, %v85
    %v422 = vmul.f32 %v390, %v86
    %v423 = vmul.f32 %v391, %v87
    %v424 = vmul.f32 %v392, %v88
    %v425 = vmul.f32 %v393, %v89
    %v426 = vmul.f32 %v394, %v90
    %v427 = vmul.f32 %v395, %v91
    %v428 = vmul.f32 %v396, %v92
    %v429 = vmul.f32 %v397, %v93
    %v430 = vmul.f32 %v398, %v94
    %v431 = vmul.f32 %v399, %v95
    %v432 = vmul.f32 %v400, %v96
    %v433 = vmul.f32 %v401, %v97
    %v434 = vmul.f32 %v402, %v98
    %v435 = vmul.f32 %v403, %v99
    %v436 = vmul.f32 %v404, %v100
    %v437 = vadd.f32 %v405, %v421
    %v438 = vadd.f32 %v406, %v422
    %v439 = vadd.f32 %v407, %v423
    %v440 = vadd.f32 %v408, %v424
    %v441 = vadd.f32 %v409, %v425
    %v442 = vadd.f32 %v410, %v426
    %v443 = vadd.f32 %v411, %v427
    %v444 = vadd.f32 %v412, %v428
    %v445 = vadd.f32 %v413, %v429
    %v446 = vadd.f32 %v414, %v430
    %v447 = vadd.f32 %v415, %v431
    %v448 = vadd.f32 %v416, %v432
    %v449 = vadd.f32 %v417, %v433
    %v450 = vadd.f32 %v418, %v434
    %v451 = vadd.f32 %v419, %v435
    %v452 = vadd.f32 %v420, %v436
    %p453 = scmp.eq.s32.totalorder 0, 0
    // Predicated region
    $region46: #{tpu_custom_call.1} parent=1 // pred_check
      %p454 = pneg %p453
    $region47: #{tpu_custom_call.1} parent=1 // pred_check_branch
      %456 = sbr.rel (%p454) target = $region49
    $region48: #{tpu_custom_call.1} parent=1 // pred_region
      %457 = vst [vmem:[#allocation2] sm:$0xff] 0.0
      %v458 = vld [vmem:[%s6] sm:$0x1]
      %v459 = vld [vmem:[%s5] sm:$0x1]
      %v460 = vmax.f32 %v459, 0.0
      %vm461 = vcmp.ne.f32.partialorder %v459, %v459
      %v462 = vadd.f32 %v459, 0.0
      %v463 = vand.u32 2147483647, %v459
      %v464 = vsub.f32 0.0, %v463
      %v465 = vmul.f32 %v464, 1.442695
      %v466 = vpow.pop %v465
      %v467 = vadd.f32 %v466, 1.0
      %v468 = vlog2.pop %v467
      %v469 = vmul.f32 %v468, 0.6931472
      %v470 = vmul.f32 -0.5, %v466
      %v471 = vadd.f32 %v470, 1.0
      %v472 = vmul.f32 %v471, %v466
      %v473 = vand.u32 2147483647, %v466
      %vm474 = vcmp.lt.f32.partialorder %v473, 0.0004427343
      %v475 = vsel %vm474, %v472, %v469
      %v476 = vadd.f32 %v460, %v475
      %v477 = vsel %vm461, %v462, %v476
      %v478 = vld [vmem:[%s4] sm:$0x1]
      %v479 = vmul.f32 %v477, %v458
      %v480 = vadd.f32 %v478, %v479
      %481 = vst [vmem:[#allocation3] sm:$0x1] %v480
      %v482 = vmul.f32 %v480, %v480
      %vm483 = vcmask 1040384
      %v484 = vsel %vm483, %v482, 0.0
      %485 = vadd.xlane.f32.xlu0 %v484
      %v486 = vpop.xlane.xlu0 %485
      %v487 = vrot.slane %v486, 4
      %v488 = vadd.f32 %v486, %v487
      %v489 = vrot.slane %v488, 2
      %v490 = vadd.f32 %v488, %v489
      %v491 = vrot.slane %v490, 1
      %v492 = vadd.f32 %v490, %v491
      %s493 = vtos %v492
      %s494 = smul.f32 %s493, -0.5
      %s495 = scalar_lea.smem [#allocation4], 0
      %496 = sst [smem:[%s495]] %s494
      %v497 = vlog2.pop %v477
      %v498 = vmul.f32 %v497, 0.6931472
      %v499 = vsel %vm483, %v498, 0.0
      %500 = vadd.xlane.f32.xlu0 %v499
      %v501 = vpop.xlane.xlu0 %500
      %v502 = vrot.slane %v501, 4
      %v503 = vadd.f32 %v501, %v502
      %v504 = vrot.slane %v503, 2
      %v505 = vadd.f32 %v503, %v504
      %v506 = vrot.slane %v505, 1
      %v507 = vadd.f32 %v505, %v506
      %s508 = vtos %v507
      %s509 = ssub.f32 0.0, %s508
      %v510 = vmul.f32 %v458, %v458
      %v511 = vsel %vm483, %v510, 0.0
      %512 = vadd.xlane.f32.xlu0 %v511
      %v513 = vpop.xlane.xlu0 %512
      %v514 = vrot.slane %v513, 4
      %v515 = vadd.f32 %v513, %v514
      %v516 = vrot.slane %v515, 2
      %v517 = vadd.f32 %v515, %v516
      %v518 = vrot.slane %v517, 1
      %v519 = vadd.f32 %v517, %v518
      %s520 = vtos %v519
      %s521 = smul.f32 %s520, 0.5
      %s522 = ssub.f32 %s509, %s521
      %s523 = scalar_lea.smem [#allocation4], 1
      %524 = sst [smem:[%s523]] %s522
    $region49: #{tpu_custom_call.1} parent=1 // pred_fallthru
      _
    %v525 = vld [vmem:[#allocation2] sm:$0xff]
    %v526 = vld [vmem:[#allocation5] sm:$0xff]
    %527 = vmatprep.subr.mxu0 0.0
    %528 = vmatpush1.msra.mxu0 %v437
    %529 = vmatprep.subr.mxu0 0.0
    %530 = vmatpush1.msra.mxu0 %v438
    %531 = vmatprep.subr.mxu0 0.0
    %532 = vmatpush1.msra.mxu0 %v439
    %533 = vmatprep.subr.mxu0 0.0
    %534 = vmatpush1.msra.mxu0 %v440
    %535 = vmatprep.subr.mxu0 0.0
    %536 = vmatpush1.msra.mxu0 %v441
    %537 = vmatprep.subr.mxu0 0.0
    %538 = vmatpush1.msra.mxu0 %v442
    %539 = vmatprep.subr.mxu0 0.0
    %540 = vmatpush1.msra.mxu0 %v443
    %541 = vmatprep.subr.mxu0 0.0
    %542 = vmatpush1.msra.mxu0 %v444
    %543 = vmatprep.subr.mxu0 0.0
    %544 = vmatpush1.msra.mxu0 %v445
    %545 = vmatprep.subr.mxu0 0.0
    %546 = vmatpush1.msra.mxu0 %v446
    %547 = vmatprep.subr.mxu0 0.0
    %548 = vmatpush1.msra.mxu0 %v447
    %549 = vmatprep.subr.mxu0 0.0
    %550 = vmatpush1.msra.mxu0 %v448
    %551 = vmatprep.subr.mxu0 0.0
    %552 = vmatpush1.msra.mxu0 %v449
    %553 = vmatprep.subr.mxu0 0.0
    %554 = vmatpush1.msra.mxu0 %v450
    %555 = vmatprep.subr.mxu0 0.0
    %556 = vmatpush1.msra.mxu0 %v451
    %557 = vmatprep.subr.mxu0 0.0
    %558 = vmatpush1.msra.mxu0 %v452
    %559 = vmatprep.subr.mxu0 0.0
    %560 = vmatpush1.msra.mxu0 0.0
    %561 = vmatprep.subr.mxu0 0.0
    %562 = vmatpush1.msra.mxu0 0.0
    %563 = vmatprep.subr.mxu0 0.0
    %564 = vmatpush1.msra.mxu0 0.0
    %565 = vmatprep.subr.mxu0 0.0
    %566 = vmatpush1.msra.mxu0 0.0
    %567 = vmatprep.subr.mxu0 0.0
    %568 = vmatpush1.msra.mxu0 0.0
    %569 = vmatprep.subr.mxu0 0.0
    %570 = vmatpush1.msra.mxu0 0.0
    %571 = vmatprep.subr.mxu0 0.0
    %572 = vmatpush1.msra.mxu0 0.0
    %573 = vmatprep.subr.mxu0 0.0
    %574 = vmatpush1.msra.mxu0 0.0
    %575 = vmatprep.subr.mxu0 0.0
    %576 = vmatpush1.msra.mxu0 0.0
    %577 = vmatprep.subr.mxu0 0.0
    %578 = vmatpush1.msra.mxu0 0.0
    %579 = vmatprep.subr.mxu0 0.0
    %580 = vmatpush1.msra.mxu0 0.0
    %581 = vmatprep.subr.mxu0 0.0
    %582 = vmatpush1.msra.mxu0 0.0
    %583 = vmatprep.subr.mxu0 0.0
    %584 = vmatpush1.msra.mxu0 0.0
    %585 = vmatprep.subr.mxu0 0.0
    %586 = vmatpush1.msra.mxu0 0.0
    %587 = vmatprep.subr.mxu0 0.0
    %588 = vmatpush1.msra.mxu0 0.0
    %589 = vmatprep.subr.mxu0 0.0
    %590 = vmatpush1.msra.mxu0 0.0
    %591 = vmatprep.mubr.f32.mxu0 0.0
    %592 = vmatmul.mubr.f32.gmra.mrb[0].mxu0 %v526
    %v593 = vpop.f32.mrb[0].mxu0
    %v594 = vadd.f32 0.0, %v593
    %v595 = vpop.f32.mrb[0].mxu0
    %596 = vdwg.mxu0
    %v597 = vadd.f32 %v525, %v594
    %598 = vst [vmem:[#allocation2] sm:$0xff] %v597
    %s599 = sld [smem:[#allocation4]]
    %v600 = vmul.f32 %v437, %v437
    %v601 = vmul.f32 %v438, %v438
    %v602 = vmul.f32 %v439, %v439
    %v603 = vmul.f32 %v440, %v440
    %v604 = vmul.f32 %v441, %v441
    %v605 = vmul.f32 %v442, %v442
    %v606 = vmul.f32 %v443, %v443
    %v607 = vmul.f32 %v444, %v444
    %v608 = vmul.f32 %v445, %v445
    %v609 = vmul.f32 %v446, %v446
    %v610 = vmul.f32 %v447, %v447
    %v611 = vmul.f32 %v448, %v448
    %v612 = vmul.f32 %v449, %v449
    %v613 = vmul.f32 %v450, %v450
    %v614 = vmul.f32 %v451, %v451
    %v615 = vmul.f32 %v452, %v452
    %v616 = vadd.f32 %v600, %v601
    %v617 = vadd.f32 %v616, %v602
    %v618 = vadd.f32 %v617, %v603
    %v619 = vadd.f32 %v618, %v604
    %v620 = vadd.f32 %v619, %v605
    %v621 = vadd.f32 %v620, %v606
    %v622 = vadd.f32 %v621, %v607
    %v623 = vadd.f32 %v622, %v608
    %v624 = vadd.f32 %v623, %v609
    %v625 = vadd.f32 %v624, %v610
    %v626 = vadd.f32 %v625, %v611
    %v627 = vadd.f32 %v626, %v612
    %v628 = vadd.f32 %v627, %v613
    %v629 = vadd.f32 %v628, %v614
    %v630 = vadd.f32 %v629, %v615
    %631 = vadd.xlane.f32.xlu0 %v630
    %v632 = vpop.xlane.xlu0 %631
    %v633 = vrot.slane %v632, 4
    %v634 = vadd.f32 %v632, %v633
    %v635 = vrot.slane %v634, 2
    %v636 = vadd.f32 %v634, %v635
    %v637 = vrot.slane %v636, 1
    %v638 = vadd.f32 %v636, %v637
    %s639 = vtos %v638
    %s640 = smul.f32 %s639, -0.5
    %s641 = sadd.f32 %s599, %s640
    %s642 = scalar_lea.smem [#allocation4], 0
    %643 = sst [smem:[%s642]] %s641
    %s644 = sld [smem:[#allocation4 + $0x1]]
    %v645 = vlog2.pop %v389
    %v646 = vmul.f32 %v645, 0.6931472
    %v647 = vlog2.pop %v390
    %v648 = vmul.f32 %v647, 0.6931472
    %v649 = vlog2.pop %v391
    %v650 = vmul.f32 %v649, 0.6931472
    %v651 = vlog2.pop %v392
    %v652 = vmul.f32 %v651, 0.6931472
    %v653 = vlog2.pop %v393
    %v654 = vmul.f32 %v653, 0.6931472
    %v655 = vlog2.pop %v394
    %v656 = vmul.f32 %v655, 0.6931472
    %v657 = vlog2.pop %v395
    %v658 = vmul.f32 %v657, 0.6931472
    %v659 = vlog2.pop %v396
    %v660 = vmul.f32 %v659, 0.6931472
    %v661 = vlog2.pop %v397
    %v662 = vmul.f32 %v661, 0.6931472
    %v663 = vlog2.pop %v398
    %v664 = vmul.f32 %v663, 0.6931472
    %v665 = vlog2.pop %v399
    %v666 = vmul.f32 %v665, 0.6931472
    %v667 = vlog2.pop %v400
    %v668 = vmul.f32 %v667, 0.6931472
    %v669 = vlog2.pop %v401
    %v670 = vmul.f32 %v669, 0.6931472
    %v671 = vlog2.pop %v402
    %v672 = vmul.f32 %v671, 0.6931472
    %v673 = vlog2.pop %v403
    %v674 = vmul.f32 %v673, 0.6931472
    %v675 = vlog2.pop %v404
    %v676 = vmul.f32 %v675, 0.6931472
    %v677 = vadd.f32 %v646, %v648
    %v678 = vadd.f32 %v677, %v650
    %v679 = vadd.f32 %v678, %v652
    %v680 = vadd.f32 %v679, %v654
    %v681 = vadd.f32 %v680, %v656
    %v682 = vadd.f32 %v681, %v658
    %v683 = vadd.f32 %v682, %v660
    %v684 = vadd.f32 %v683, %v662
    %v685 = vadd.f32 %v684, %v664
    %v686 = vadd.f32 %v685, %v666
    %v687 = vadd.f32 %v686, %v668
    %v688 = vadd.f32 %v687, %v670
    %v689 = vadd.f32 %v688, %v672
    %v690 = vadd.f32 %v689, %v674
    %v691 = vadd.f32 %v690, %v676
    %692 = vadd.xlane.f32.xlu0 %v691
    %v693 = vpop.xlane.xlu0 %692
    %v694 = vrot.slane %v693, 4
    %v695 = vadd.f32 %v693, %v694
    %v696 = vrot.slane %v695, 2
    %v697 = vadd.f32 %v695, %v696
    %v698 = vrot.slane %v697, 1
    %v699 = vadd.f32 %v697, %v698
    %s700 = vtos %v699
    %s701 = ssub.f32 0.0, %s700
    %v702 = vmul.f32 %v85, %v85
    %v703 = vmul.f32 %v86, %v86
    %v704 = vmul.f32 %v87, %v87
    %v705 = vmul.f32 %v88, %v88
    %v706 = vmul.f32 %v89, %v89
    %v707 = vmul.f32 %v90, %v90
    %v708 = vmul.f32 %v91, %v91
    %v709 = vmul.f32 %v92, %v92
    %v710 = vmul.f32 %v93, %v93
    %v711 = vmul.f32 %v94, %v94
    %v712 = vmul.f32 %v95, %v95
    %v713 = vmul.f32 %v96, %v96
    %v714 = vmul.f32 %v97, %v97
    %v715 = vmul.f32 %v98, %v98
    %v716 = vmul.f32 %v99, %v99
    %v717 = vmul.f32 %v100, %v100
    %v718 = vadd.f32 %v702, %v703
    %v719 = vadd.f32 %v718, %v704
    %v720 = vadd.f32 %v719, %v705
    %v721 = vadd.f32 %v720, %v706
    %v722 = vadd.f32 %v721, %v707
    %v723 = vadd.f32 %v722, %v708
    %v724 = vadd.f32 %v723, %v709
    %v725 = vadd.f32 %v724, %v710
    %v726 = vadd.f32 %v725, %v711
    %v727 = vadd.f32 %v726, %v712
    %v728 = vadd.f32 %v727, %v713
    %v729 = vadd.f32 %v728, %v714
    %v730 = vadd.f32 %v729, %v715
    %v731 = vadd.f32 %v730, %v716
    %v732 = vadd.f32 %v731, %v717
    %733 = vadd.xlane.f32.xlu0 %v732
    %v734 = vpop.xlane.xlu0 %733
    %v735 = vrot.slane %v734, 4
    %v736 = vadd.f32 %v734, %v735
    %v737 = vrot.slane %v736, 2
    %v738 = vadd.f32 %v736, %v737
    %v739 = vrot.slane %v738, 1
    %v740 = vadd.f32 %v738, %v739
    %s741 = vtos %v740
    %s742 = smul.f32 %s741, 0.5
    %s743 = ssub.f32 %s701, %s742
    %s744 = sadd.f32 %s644, %s743
    %s745 = scalar_lea.smem [#allocation4], 1
    %746 = sst [smem:[%s745]] %s744
    // Predicated region
    $region50: #{tpu_custom_call.1} parent=1 // pred_check
      %p747 = pneg %p453
    $region51: #{tpu_custom_call.1} parent=1 // pred_check_branch
      %749 = sbr.rel (%p747) target = $region53
    $region52: #{tpu_custom_call.1} parent=1 // pred_region
      %v750 = vld [vmem:[#allocation2] sm:$0xff]
      %v751 = vld [vmem:[#allocation3] sm:$0x1]
      %v753 = vlaneseq
      %v754 = vshrl.u32 %v753, 7
      %v755 = vsub.s32 0, %v754
      %v756 = vrot.slane %v751, %v755
      %v758 = vadd.f32 %v750, %v756
      %759 = vst [vmem:[#allocation14] sm:$0xff] %v758
      %s760 = sld [smem:[#allocation4]]
      %s761 = scalar_lea.smem [#allocation15], 0
      %762 = sst [smem:[%s761]] %s760
      %s763 = sld [smem:[#allocation4 + $0x1]]
      %s764 = scalar_lea.smem [#allocation16], 0
      %765 = sst [smem:[%s764]] %s763
    $region53: #{tpu_custom_call.1} parent=1 // pred_fallthru
      _
    // Predicated region
    $region54: #{tpu_custom_call.1} parent=1 // pred_check
      _
    $region55: #{tpu_custom_call.1} parent=1 // pred_check_branch
      %767 = sbr.rel (0) target = $region57
    $region56: #{tpu_custom_call.1} parent=1 // pred_region
      %s769 = ssub.s32 128, 128
      %770 = vsyncadd [#allocation7], %s769
      %s772 = sshll.u32 [#allocation14], 4
      %s773 = int_to_ptr.vmem [resolvable:$true] %s772
      %775 = dma.vmem_to_hbm [thread:$0]  %s773, 128, %s7, [#allocation7]
    $region57: #{tpu_custom_call.1} parent=1 // pred_fallthru
      _
    // Predicated region
    $region58: #{tpu_custom_call.1} parent=1 // pred_check
      _
    $region59: #{tpu_custom_call.1} parent=1 // pred_check_branch
      %777 = sbr.rel (0) target = $region61
    $region60: #{tpu_custom_call.1} parent=1 // pred_region
      %s779 = ssub.s32 16, 16
      %780 = vsyncadd [#allocation8], %s779
      %783 = dma.smem_to_hbm [#allocation15], 16, %s8, [#allocation8]
    $region61: #{tpu_custom_call.1} parent=1 // pred_fallthru
      _
    // Predicated region
    $region62: #{tpu_custom_call.1} parent=1 // pred_check
      _
    $region63: #{tpu_custom_call.1} parent=1 // pred_check_branch
      %785 = sbr.rel (0) target = $region65
    $region64: #{tpu_custom_call.1} parent=1 // pred_region
      %s787 = ssub.s32 16, 16
      %788 = vsyncadd [#allocation17], %s787
      %791 = dma.smem_to_hbm [#allocation16], 16, %s9, [#allocation17]
    $region65: #{tpu_custom_call.1} parent=1 // pred_fallthru
      _
    // Predicated region
    $region66: #{tpu_custom_call.1} parent=1 // pred_check
      _
    $region67: #{tpu_custom_call.1} parent=1 // pred_check_branch
      %793 = sbr.rel (0) target = $region69
    $region68: #{tpu_custom_call.1} parent=1 // pred_region
      %794 = dma.done [#allocation7], 128
    $region69: #{tpu_custom_call.1} parent=1 // pred_fallthru
      _
    // Predicated region
    $region70: #{tpu_custom_call.1} parent=1 // pred_check
      _
    $region71: #{tpu_custom_call.1} parent=1 // pred_check_branch
      %796 = sbr.rel (0) target = $region73
    $region72: #{tpu_custom_call.1} parent=1 // pred_region
      %797 = dma.done [#allocation8], 16
    $region73: #{tpu_custom_call.1} parent=1 // pred_fallthru
      _
    // Predicated region
    $region74: #{tpu_custom_call.1} parent=1 // pred_check
      _
    $region75: #{tpu_custom_call.1} parent=1 // pred_check_branch
      %799 = sbr.rel (0) target = $region77
    $region76: #{tpu_custom_call.1} parent=1 // pred_region
      %800 = dma.done [#allocation17], 16
    $region77: #{tpu_custom_call.1} parent=1 // pred_fallthru
      _
    %801 = sfence
    %802 = vsyncpa [#allocation6], 1
    %803 = vsyncpa [#allocation10], 1
    %804 = vsyncpa [#allocation13], 1
    %805 = vsyncpa [#allocation7], 1
    %806 = vsyncpa [#allocation8], 1
    %807 = vsyncpa [#allocation17], 1

</llo_original>
